<compile_context>
chip_gen: v6e
topology: v6e:2x2x1
jax: 0.10.0
libtpu: 0.0.40
codegen_flags: <defaults>
</compile_context>

<pallas_src>
import math

import jax
import jax.numpy as jnp
from jax.experimental import pallas as pl
from jax.experimental.pallas import tpu as pltpu

IN_DIM = 10
H1, H2 = 64, 32
OUT_DIM = 2


def mlp_kernel(x_ref, w1_ref, b1_ref, w2_ref, b2_ref, w3_ref, b3_ref, o_ref):
    # In-kernel bf16 cast of the streamed activations; all accumulation / bias /
    # ReLU / sigmoid in f32 (v5e has no bf16 VPU/EUP path).
    x = x_ref[...].astype(jnp.bfloat16)
    h1 = jnp.dot(x, w1_ref[...], preferred_element_type=jnp.float32)
    h1 = jnp.maximum(h1 + b1_ref[...], 0.0)
    h2 = jnp.dot(h1.astype(jnp.bfloat16), w2_ref[...],
                 preferred_element_type=jnp.float32)
    h2 = jnp.maximum(h2 + b2_ref[...], 0.0)
    logits = jnp.dot(h2.astype(jnp.bfloat16), w3_ref[...],
                     preferred_element_type=jnp.float32)
    o_ref[...] = jax.nn.sigmoid(logits + b3_ref[...])


def prepare_params(params):
    """One-time cast of the MXU operands (weights) to bf16; biases stay f32."""
    w1, b1, w2, b2, w3, b3 = params
    return (w1.astype(jnp.bfloat16), b1,
            w2.astype(jnp.bfloat16), b2,
            w3.astype(jnp.bfloat16), b3)


def healthcare_prediction_forward(x, prepared_params, block_batch=8192):
    """x: [B, 10] f32; prepared_params: bf16 weights ([in, out]) + f32 biases ([1, out])."""
    w1, b1, w2, b2, w3, b3 = prepared_params
    B, in_dim = x.shape
    out_dim = w3.shape[1]

    # Batch tile: multiple of 8 (sublane), capped for small batches. No batch padding;
    # Pallas masks the ragged last block.
    tb = min(block_batch, pl.cdiv(B, 8) * 8)
    grid = (pl.cdiv(B, tb),)

    resident = lambda shape: pl.BlockSpec(shape, lambda i: (0, 0))

    flops = 2 * B * (in_dim * H1 + H1 * H2 + H2 * out_dim)
    bytes_accessed = (x.size * 4 + B * out_dim * 4
                      + (w1.size + w2.size + w3.size) * 2
                      + (b1.size + b2.size + b3.size) * 4)

    out = pl.pallas_call(
        mlp_kernel,
        out_shape=jax.ShapeDtypeStruct((B, out_dim), jnp.float32),
        grid=grid,
        in_specs=[
            pl.BlockSpec((tb, in_dim), lambda i: (i, 0)),  # x: streamed f32 per batch tile
            resident((in_dim, H1)),                        # w1 (bf16, VMEM-resident)
            resident((1, H1)),                             # b1
            resident((H1, H2)),                            # w2
            resident((1, H2)),                             # b2
            resident((H2, out_dim)),                       # w3
            resident((1, out_dim)),                        # b3
        ],
        out_specs=pl.BlockSpec((tb, out_dim), lambda i: (i, 0)),
        compiler_params=pltpu.CompilerParams(
            dimension_semantics=("parallel",),             # megacore / v7x 2-TC sharding
        ),
        cost_estimate=pl.CostEstimate(
            flops=flops,
            transcendentals=B * out_dim,
            bytes_accessed=bytes_accessed,
        ),
    )(x, w1, b1, w2, b2, w3, b3)

    return out


def init_linear_params(key, in_features, out_features):
    """Deterministic init mimicking torch.nn.Linear (uniform +/- 1/sqrt(fan_in)).
    Weight stored as [in_features, out_features] (pre-transposed)."""
    kw, kb = jax.random.split(key)
    bound = 1.0 / math.sqrt(in_features)
    w = jax.random.uniform(kw, (in_features, out_features), jnp.float32, -bound, bound)
    b = jax.random.uniform(kb, (1, out_features), jnp.float32, -bound, bound)
    return w, b


if __name__ == "__main__":
    batch = 20          # deliberately not a multiple of the tile below

    key = jax.random.PRNGKey(0)
    k_x, k1, k2, k3 = jax.random.split(key, 4)

    w1, b1 = init_linear_params(k1, IN_DIM, H1)
    w2, b2 = init_linear_params(k2, H1, H2)
    w3, b3 = init_linear_params(k3, H2, OUT_DIM)
    params = (w1, b1, w2, b2, w3, b3)
    prepared = prepare_params(params)

    x = jax.random.normal(k_x, (batch, IN_DIM), jnp.float32)

    # small block_batch so the test exercises multiple grid steps + the ragged last tile
    out = healthcare_prediction_forward(x, prepared, block_batch=8)
    out = jax.block_until_ready(out)

    # Reference mirroring the kernel's numerics (bf16 MXU operands, f32 accumulation).
    # NOTE: bf16 weights deviate from a pure-f32 PyTorch forward by ~1e-2 relative.
    xb = x.astype(jnp.bfloat16)
    w1b, w2b, w3b = (w.astype(jnp.bfloat16) for w in (w1, w2, w3))
    r1 = jnp.maximum(jnp.dot(xb, w1b, preferred_element_type=jnp.float32) + b1, 0.0)
    r2 = jnp.maximum(jnp.dot(r1.astype(jnp.bfloat16), w2b,
                             preferred_element_type=jnp.float32) + b2, 0.0)
    ref = jax.nn.sigmoid(jnp.dot(r2.astype(jnp.bfloat16), w3b,
                                 preferred_element_type=jnp.float32) + b3)

    assert out.shape == (batch, OUT_DIM)
    assert jnp.allclose(out, ref, atol=5e-3), "mismatch vs reference"

    print("KERNEL_OK")
</pallas_src>

<mosaic_0001>
module attributes {stable_mosaic.version = 11 : i64} {
  func.func @mlp_kernel(%arg0: i32, %arg1: memref<8x10xf32, #tpu.memory_space<vmem>>, %arg2: memref<10x64xbf16, #tpu.memory_space<vmem>>, %arg3: memref<1x64xf32, #tpu.memory_space<vmem>>, %arg4: memref<64x32xbf16, #tpu.memory_space<vmem>>, %arg5: memref<1x32xf32, #tpu.memory_space<vmem>>, %arg6: memref<32x2xbf16, #tpu.memory_space<vmem>>, %arg7: memref<1x2xf32, #tpu.memory_space<vmem>>, %arg8: memref<8x2xf32, #tpu.memory_space<vmem>>) attributes {dimension_semantics = [#tpu.dimension_semantics<parallel>], iteration_bounds = array<i64: 3>, scalar_prefetch = 0 : i64, scratch_operands = 0 : i64, tpu.core_type = #tpu.core_type<tc>, window_params = [{transform_indices = @transform_0, window_bounds = array<i64: 8, 10>}, {pipeline_mode = #tpu.pipeline_mode<synchronous>, transform_indices = @transform_1, window_bounds = array<i64: 10, 64>}, {pipeline_mode = #tpu.pipeline_mode<synchronous>, transform_indices = @transform_2, window_bounds = array<i64: 1, 64>}, {pipeline_mode = #tpu.pipeline_mode<synchronous>, transform_indices = @transform_3, window_bounds = array<i64: 64, 32>}, {pipeline_mode = #tpu.pipeline_mode<synchronous>, transform_indices = @transform_4, window_bounds = array<i64: 1, 32>}, {pipeline_mode = #tpu.pipeline_mode<synchronous>, transform_indices = @transform_5, window_bounds = array<i64: 32, 2>}, {pipeline_mode = #tpu.pipeline_mode<synchronous>, transform_indices = @transform_6, window_bounds = array<i64: 1, 2>}, {transform_indices = @transform_7, window_bounds = array<i64: 8, 2>}]} {
    %c0 = arith.constant 0 : index
    %c0_0 = arith.constant 0 : index
    %0 = vector.load %arg1[%c0, %c0_0] : memref<8x10xf32, #tpu.memory_space<vmem>>, vector<8x10xf32>
    %1 = arith.truncf %0 : vector<8x10xf32> to vector<8x10xbf16>
    %c0_1 = arith.constant 0 : index
    %c0_2 = arith.constant 0 : index
    %2 = vector.load %arg2[%c0_1, %c0_2] : memref<10x64xbf16, #tpu.memory_space<vmem>>, vector<10x64xbf16>
    %cst = arith.constant dense<0.000000e+00> : vector<8x64xf32>
    %3 = tpu.matmul %1, %2, %cst {dimension_numbers = #tpu.dot_dimension_numbers<[1], [0], [0], [1], [0, 0, 1, 1], [], []>} : vector<8x10xbf16>, vector<10x64xbf16>, vector<8x64xf32> -> vector<8x64xf32>
    %c0_3 = arith.constant 0 : index
    %c0_4 = arith.constant 0 : index
    %4 = vector.load %arg3[%c0_3, %c0_4] : memref<1x64xf32, #tpu.memory_space<vmem>>, vector<1x64xf32>
    %5 = vector.broadcast %4 : vector<1x64xf32> to vector<8x64xf32>
    %6 = arith.addf %3, %5 : vector<8x64xf32>
    %cst_5 = arith.constant 0.000000e+00 : f32
    %7 = vector.broadcast %cst_5 : f32 to vector<8x64xf32>
    %8 = arith.maximumf %6, %7 : vector<8x64xf32>
    %9 = arith.truncf %8 : vector<8x64xf32> to vector<8x64xbf16>
    %c0_6 = arith.constant 0 : index
    %c0_7 = arith.constant 0 : index
    %10 = vector.load %arg4[%c0_6, %c0_7] : memref<64x32xbf16, #tpu.memory_space<vmem>>, vector<64x32xbf16>
    %cst_8 = arith.constant dense<0.000000e+00> : vector<8x32xf32>
    %11 = tpu.matmul %9, %10, %cst_8 {dimension_numbers = #tpu.dot_dimension_numbers<[1], [0], [0], [1], [0, 0, 1, 1], [], []>} : vector<8x64xbf16>, vector<64x32xbf16>, vector<8x32xf32> -> vector<8x32xf32>
    %c0_9 = arith.constant 0 : index
    %c0_10 = arith.constant 0 : index
    %12 = vector.load %arg5[%c0_9, %c0_10] : memref<1x32xf32, #tpu.memory_space<vmem>>, vector<1x32xf32>
    %13 = vector.broadcast %12 : vector<1x32xf32> to vector<8x32xf32>
    %14 = arith.addf %11, %13 : vector<8x32xf32>
    %cst_11 = arith.constant 0.000000e+00 : f32
    %15 = vector.broadcast %cst_11 : f32 to vector<8x32xf32>
    %16 = arith.maximumf %14, %15 : vector<8x32xf32>
    %17 = arith.truncf %16 : vector<8x32xf32> to vector<8x32xbf16>
    %c0_12 = arith.constant 0 : index
    %c0_13 = arith.constant 0 : index
    %18 = vector.load %arg6[%c0_12, %c0_13] : memref<32x2xbf16, #tpu.memory_space<vmem>>, vector<32x2xbf16>
    %cst_14 = arith.constant dense<0.000000e+00> : vector<8x2xf32>
    %19 = tpu.matmul %17, %18, %cst_14 {dimension_numbers = #tpu.dot_dimension_numbers<[1], [0], [0], [1], [0, 0, 1, 1], [], []>} : vector<8x32xbf16>, vector<32x2xbf16>, vector<8x2xf32> -> vector<8x2xf32>
    %c0_15 = arith.constant 0 : index
    %c0_16 = arith.constant 0 : index
    %20 = vector.load %arg7[%c0_15, %c0_16] : memref<1x2xf32, #tpu.memory_space<vmem>>, vector<1x2xf32>
    %21 = vector.broadcast %20 : vector<1x2xf32> to vector<8x2xf32>
    %22 = arith.addf %19, %21 : vector<8x2xf32>
    %23 = arith.negf %22 : vector<8x2xf32>
    %24 = math.exp %23 : vector<8x2xf32>
    %cst_17 = arith.constant 1.000000e+00 : f32
    %25 = vector.broadcast %cst_17 : f32 to vector<8x2xf32>
    %26 = arith.addf %25, %24 : vector<8x2xf32>
    %27 = arith.divf %25, %26 : vector<8x2xf32>
    %c0_18 = arith.constant 0 : index
    %c0_19 = arith.constant 0 : index
    %28 = vector.load %arg8[%c0_18, %c0_19] : memref<8x2xf32, #tpu.memory_space<vmem>>, vector<8x2xf32>
    tpu.vector_store %arg8[%c0_18, %c0_19], %27 {strides = array<i32>} : memref<8x2xf32, #tpu.memory_space<vmem>>, vector<8x2xf32>,
    return
  }
  func.func @transform_0(%arg0: i32) -> (i32, i32) {
    %c0_i32 = arith.constant 0 : i32
    %c0_i32_0 = arith.constant 0 : i32
    return %arg0, %c0_i32 : i32, i32
  }
  func.func @transform_1(%arg0: i32) -> (i32, i32) {
    %c0_i32 = arith.constant 0 : i32
    %c0_i32_0 = arith.constant 0 : i32
    %c0_i32_1 = arith.constant 0 : i32
    return %c0_i32, %c0_i32_0 : i32, i32
  }
  func.func @transform_2(%arg0: i32) -> (i32, i32) {
    %c0_i32 = arith.constant 0 : i32
    %c0_i32_0 = arith.constant 0 : i32
    %c0_i32_1 = arith.constant 0 : i32
    return %c0_i32, %c0_i32_0 : i32, i32
  }
  func.func @transform_3(%arg0: i32) -> (i32, i32) {
    %c0_i32 = arith.constant 0 : i32
    %c0_i32_0 = arith.constant 0 : i32
    %c0_i32_1 = arith.constant 0 : i32
    return %c0_i32, %c0_i32_0 : i32, i32
  }
  func.func @transform_4(%arg0: i32) -> (i32, i32) {
    %c0_i32 = arith.constant 0 : i32
    %c0_i32_0 = arith.constant 0 : i32
    %c0_i32_1 = arith.constant 0 : i32
    return %c0_i32, %c0_i32_0 : i32, i32
  }
  func.func @transform_5(%arg0: i32) -> (i32, i32) {
    %c0_i32 = arith.constant 0 : i32
    %c0_i32_0 = arith.constant 0 : i32
    %c0_i32_1 = arith.constant 0 : i32
    return %c0_i32, %c0_i32_0 : i32, i32
  }
  func.func @transform_6(%arg0: i32) -> (i32, i32) {
    %c0_i32 = arith.constant 0 : i32
    %c0_i32_0 = arith.constant 0 : i32
    %c0_i32_1 = arith.constant 0 : i32
    return %c0_i32, %c0_i32_0 : i32, i32
  }
  func.func @transform_7(%arg0: i32) -> (i32, i32) {
    %c0_i32 = arith.constant 0 : i32
    %c0_i32_0 = arith.constant 0 : i32
    return %arg0, %c0_i32 : i32, i32
  }
}

</mosaic_0001>

<llo_original>
// kernel: tpu_custom_call.1
$region0: #{tpu_custom_call.1}
  #allocation0 [shape = 'u32[]', space=smem, size = 0x4, offset = 0x4, fixed_abs, tag = 'smem constant byte address 0x4 - core index']
  #allocation1 [shape = 'u32[144,128]{1,0:T(1,128)}', space=vmem, size = 0x12000, scoped, tag = 'internal scratch']
  %s0 = inlined_call_operand.vmem [shape: f32[20,10], index: 0, kind: input, shape index: {}]
  %s1 = inlined_call_operand.vmem [shape: bf16[10,64], index: 1, kind: input, shape index: {}]
  %s2 = inlined_call_operand.vmem [shape: f32[1,64], index: 2, kind: input, shape index: {}]
  %s3 = inlined_call_operand.vmem [shape: bf16[64,32], index: 3, kind: input, shape index: {}]
  %s4 = inlined_call_operand.vmem [shape: f32[1,32], index: 4, kind: input, shape index: {}]
  %s5 = inlined_call_operand.vmem [shape: bf16[32,2], index: 5, kind: input, shape index: {}]
  %s6 = inlined_call_operand.vmem [shape: f32[1,2], index: 6, kind: input, shape index: {}]
  %s7 = inlined_call_operand.vmem [shape: f32[20,2], index: 7, kind: output, shape index: {}]
  %s8 = sld [smem:[#allocation0]]
  $region61: #{tpu_custom_call.1} parent=0
    _
  %s10 = ssub.s32 1, %s8
  %s11 = scalar_select 0, %s10, %s8
  loop: start=0, step=1, limit=5
  $region2: #{tpu_custom_call.1} parent=0 // loop_pre_header
    _
  $region3: #{tpu_custom_call.1} parent=0 // loop_header
    %s13 = sphi 0, %s17
    %p14 = scmp.ge.s32.totalorder %s13, 5
    %s23 = sphi 0, %s25
    %s26 = sphi 0, %s23
    %s27 = sphi 0, %s26
    %s43 = sphi 0, %s27
    %s47 = sphi 0, %s47
    %s49 = sphi 0, %s47
    %s50 = sphi 0, %s49
    %s64 = sphi 0, %s50
    %s68 = sphi 0, %s68
    %s70 = sphi 0, %s68
    %s71 = sphi 0, %s70
    %s85 = sphi 0, %s71
    %s89 = sphi 0, %s89
    %s91 = sphi 0, %s89
    %s92 = sphi 0, %s91
    %s106 = sphi 0, %s92
    %s110 = sphi 0, %s110
    %s112 = sphi 0, %s110
    %s113 = sphi 0, %s112
    %s127 = sphi 0, %s113
    %s131 = sphi 0, %s131
    %s133 = sphi 0, %s131
    %s134 = sphi 0, %s133
    %s148 = sphi 0, %s134
    %s152 = sphi 0, %s152
    %s154 = sphi 0, %s152
    %s155 = sphi 0, %s154
    %s169 = sphi 0, %s155
    %s175 = sphi 0, %s177
    %s178 = sphi 0, %s175
    %s179 = sphi 0, %s178
    %s195 = sphi 0, %s179
  $region4: #{tpu_custom_call.1} parent=0 // loop_header_branch
    %16 = sbr.rel (%p14) target = $region8
  $region5: #{tpu_custom_call.1} parent=0 // loop_body
    %s18 = ssub.s32 %s13, 1
    %s19 = ssub.s32 %s13, 2
    %s20 = sadd.s32 %s13, 1
    %s21 = ssub.s32 %s13, %s20
    %p22 = scmp.eq.s32.totalorder %s21, 0
    %s24 = sadd.s32 %s23, 1
    %s25 = scalar_select %p22, %s23, %s24
    %p28 = pneg %p22
    %p29 = scmp.eq.s32.totalorder %s13, 2
    %p30 = por %p28, %p29
    %p31 = scmp.ne.s32.totalorder %s23, %s26
    %p32 = scmp.eq.s32.totalorder %s13, 0
    %p33 = por %p31, %p32
    %p34 = scmp.ne.s32.totalorder %s23, %s26
    %p35 = scmp.eq.s32.totalorder %s18, 2
    %p36 = por %p34, %p35
    %p37 = scmp.ne.s32.totalorder %s26, %s27
    %p38 = scmp.eq.s32.totalorder %s18, 0
    %p39 = por %p37, %p38
    %p40 = scmp.ne.s32.totalorder %s26, %s27
    %p41 = scmp.eq.s32.totalorder %s19, 2
    %p42 = por %p40, %p41
    %p44 = scmp.ne.s32.totalorder %s27, %s43
    %p45 = scmp.eq.s32.totalorder %s19, 0
    %p46 = por %p44, %p45
    %s48 = sadd.s32 %s47, 1
    %p51 = scmp.eq.s32.totalorder %s13, 2
    %p52 = scmp.ne.s32.totalorder %s47, %s49
    %p53 = scmp.eq.s32.totalorder %s13, 0
    %p54 = por %p52, %p53
    %p55 = scmp.ne.s32.totalorder %s47, %s49
    %p56 = scmp.eq.s32.totalorder %s18, 2
    %p57 = por %p55, %p56
    %p58 = scmp.ne.s32.totalorder %s49, %s50
    %p59 = scmp.eq.s32.totalorder %s18, 0
    %p60 = por %p58, %p59
    %p61 = scmp.ne.s32.totalorder %s49, %s50
    %p62 = scmp.eq.s32.totalorder %s19, 2
    %p63 = por %p61, %p62
    %p65 = scmp.ne.s32.totalorder %s50, %s64
    %p66 = scmp.eq.s32.totalorder %s19, 0
    %p67 = por %p65, %p66
    %s69 = sadd.s32 %s68, 1
    %p72 = scmp.eq.s32.totalorder %s13, 2
    %p73 = scmp.ne.s32.totalorder %s68, %s70
    %p74 = scmp.eq.s32.totalorder %s13, 0
    %p75 = por %p73, %p74
    %p76 = scmp.ne.s32.totalorder %s68, %s70
    %p77 = scmp.eq.s32.totalorder %s18, 2
    %p78 = por %p76, %p77
    %p79 = scmp.ne.s32.totalorder %s70, %s71
    %p80 = scmp.eq.s32.totalorder %s18, 0
    %p81 = por %p79, %p80
    %p82 = scmp.ne.s32.totalorder %s70, %s71
    %p83 = scmp.eq.s32.totalorder %s19, 2
    %p84 = por %p82, %p83
    %p86 = scmp.ne.s32.totalorder %s71, %s85
    %p87 = scmp.eq.s32.totalorder %s19, 0
    %p88 = por %p86, %p87
    %s90 = sadd.s32 %s89, 1
    %p93 = scmp.eq.s32.totalorder %s13, 2
    %p94 = scmp.ne.s32.totalorder %s89, %s91
    %p95 = scmp.eq.s32.totalorder %s13, 0
    %p96 = por %p94, %p95
    %p97 = scmp.ne.s32.totalorder %s89, %s91
    %p98 = scmp.eq.s32.totalorder %s18, 2
    %p99 = por %p97, %p98
    %p100 = scmp.ne.s32.totalorder %s91, %s92
    %p101 = scmp.eq.s32.totalorder %s18, 0
    %p102 = por %p100, %p101
    %p103 = scmp.ne.s32.totalorder %s91, %s92
    %p104 = scmp.eq.s32.totalorder %s19, 2
    %p105 = por %p103, %p104
    %p107 = scmp.ne.s32.totalorder %s92, %s106
    %p108 = scmp.eq.s32.totalorder %s19, 0
    %p109 = por %p107, %p108
    %s111 = sadd.s32 %s110, 1
    %p114 = scmp.eq.s32.totalorder %s13, 2
    %p115 = scmp.ne.s32.totalorder %s110, %s112
    %p116 = scmp.eq.s32.totalorder %s13, 0
    %p117 = por %p115, %p116
    %p118 = scmp.ne.s32.totalorder %s110, %s112
    %p119 = scmp.eq.s32.totalorder %s18, 2
    %p120 = por %p118, %p119
    %p121 = scmp.ne.s32.totalorder %s112, %s113
    %p122 = scmp.eq.s32.totalorder %s18, 0
    %p123 = por %p121, %p122
    %p124 = scmp.ne.s32.totalorder %s112, %s113
    %p125 = scmp.eq.s32.totalorder %s19, 2
    %p126 = por %p124, %p125
    %p128 = scmp.ne.s32.totalorder %s113, %s127
    %p129 = scmp.eq.s32.totalorder %s19, 0
    %p130 = por %p128, %p129
    %s132 = sadd.s32 %s131, 1
    %p135 = scmp.eq.s32.totalorder %s13, 2
    %p136 = scmp.ne.s32.totalorder %s131, %s133
    %p137 = scmp.eq.s32.totalorder %s13, 0
    %p138 = por %p136, %p137
    %p139 = scmp.ne.s32.totalorder %s131, %s133
    %p140 = scmp.eq.s32.totalorder %s18, 2
    %p141 = por %p139, %p140
    %p142 = scmp.ne.s32.totalorder %s133, %s134
    %p143 = scmp.eq.s32.totalorder %s18, 0
    %p144 = por %p142, %p143
    %p145 = scmp.ne.s32.totalorder %s133, %s134
    %p146 = scmp.eq.s32.totalorder %s19, 2
    %p147 = por %p145, %p146
    %p149 = scmp.ne.s32.totalorder %s134, %s148
    %p150 = scmp.eq.s32.totalorder %s19, 0
    %p151 = por %p149, %p150
    %s153 = sadd.s32 %s152, 1
    %p156 = scmp.eq.s32.totalorder %s13, 2
    %p157 = scmp.ne.s32.totalorder %s152, %s154
    %p158 = scmp.eq.s32.totalorder %s13, 0
    %p159 = por %p157, %p158
    %p160 = scmp.ne.s32.totalorder %s152, %s154
    %p161 = scmp.eq.s32.totalorder %s18, 2
    %p162 = por %p160, %p161
    %p163 = scmp.ne.s32.totalorder %s154, %s155
    %p164 = scmp.eq.s32.totalorder %s18, 0
    %p165 = por %p163, %p164
    %p166 = scmp.ne.s32.totalorder %s154, %s155
    %p167 = scmp.eq.s32.totalorder %s19, 2
    %p168 = por %p166, %p167
    %p170 = scmp.ne.s32.totalorder %s155, %s169
    %p171 = scmp.eq.s32.totalorder %s19, 0
    %p172 = por %p170, %p171
    %s173 = ssub.s32 %s13, %s20
    %p174 = scmp.eq.s32.totalorder %s173, 0
    %s176 = sadd.s32 %s175, 1
    %s177 = scalar_select %p174, %s175, %s176
    %p180 = pneg %p174
    %p181 = scmp.eq.s32.totalorder %s13, 2
    %p182 = por %p180, %p181
    %p183 = scmp.ne.s32.totalorder %s175, %s178
    %p184 = scmp.eq.s32.totalorder %s13, 0
    %p185 = por %p183, %p184
    %p186 = scmp.ne.s32.totalorder %s175, %s178
    %p187 = scmp.eq.s32.totalorder %s18, 2
    %p188 = por %p186, %p187
    %p189 = scmp.ne.s32.totalorder %s178, %s179
    %p190 = scmp.eq.s32.totalorder %s18, 0
    %p191 = por %p189, %p190
    %p192 = scmp.ne.s32.totalorder %s178, %s179
    %p193 = scmp.eq.s32.totalorder %s19, 2
    %p194 = por %p192, %p193
    %p196 = scmp.ne.s32.totalorder %s179, %s195
    %p197 = scmp.eq.s32.totalorder %s19, 0
    %p198 = por %p196, %p197
    %p199 = scmp.le.s32.totalorder 1, %s13
    %p200 = scmp.lt.s32.totalorder %s13, 4
    %p201 = pnand %p199, %p200
    %p202 = pneg %p201
    // Predicated region
    $region9: #{tpu_custom_call.1} parent=5 // pred_check
      _
    $region10: #{tpu_custom_call.1} parent=5 // pred_check_branch
      %204 = sbr.rel (%p201) target = $region12
    $region11: #{tpu_custom_call.1} parent=5 // pred_region
      %s205 = ssub.s32 %s13, 1
      // Predicated region
      $region13: #{tpu_custom_call.1} parent=11 // pred_check
        %p206 = pneg %p60
      $region14: #{tpu_custom_call.1} parent=11 // pred_check_branch
        %208 = sbr.rel (%p206) target = $region16
      $region15: #{tpu_custom_call.1} parent=11 // pred_region
        _
      $region16: #{tpu_custom_call.1} parent=11 // pred_fallthru
        _
      // Predicated region
      $region17: #{tpu_custom_call.1} parent=11 // pred_check
        %p209 = pneg %p81
      $region18: #{tpu_custom_call.1} parent=11 // pred_check_branch
        %211 = sbr.rel (%p209) target = $region20
      $region19: #{tpu_custom_call.1} parent=11 // pred_region
        _
      $region20: #{tpu_custom_call.1} parent=11 // pred_fallthru
        _
      // Predicated region
      $region21: #{tpu_custom_call.1} parent=11 // pred_check
        %p212 = pneg %p102
      $region22: #{tpu_custom_call.1} parent=11 // pred_check_branch
        %214 = sbr.rel (%p212) target = $region24
      $region23: #{tpu_custom_call.1} parent=11 // pred_region
        _
      $region24: #{tpu_custom_call.1} parent=11 // pred_fallthru
        _
      // Predicated region
      $region25: #{tpu_custom_call.1} parent=11 // pred_check
        %p215 = pneg %p123
      $region26: #{tpu_custom_call.1} parent=11 // pred_check_branch
        %217 = sbr.rel (%p215) target = $region28
      $region27: #{tpu_custom_call.1} parent=11 // pred_region
        _
      $region28: #{tpu_custom_call.1} parent=11 // pred_fallthru
        _
      // Predicated region
      $region29: #{tpu_custom_call.1} parent=11 // pred_check
        %p218 = pneg %p144
      $region30: #{tpu_custom_call.1} parent=11 // pred_check_branch
        %220 = sbr.rel (%p218) target = $region32
      $region31: #{tpu_custom_call.1} parent=11 // pred_region
        _
      $region32: #{tpu_custom_call.1} parent=11 // pred_fallthru
        _
      // Predicated region
      $region33: #{tpu_custom_call.1} parent=11 // pred_check
        %p221 = pneg %p165
      $region34: #{tpu_custom_call.1} parent=11 // pred_check_branch
        %223 = sbr.rel (%p221) target = $region36
      $region35: #{tpu_custom_call.1} parent=11 // pred_region
        _
      $region36: #{tpu_custom_call.1} parent=11 // pred_fallthru
        _
    $region12: #{tpu_custom_call.1} parent=5 // pred_fallthru
      _
    %p224 = scmp.lt.s32.totalorder %s13, 3
    // Predicated region
    $region37: #{tpu_custom_call.1} parent=5 // pred_check
      %p225 = pneg %p224
    $region38: #{tpu_custom_call.1} parent=5 // pred_check_branch
      %227 = sbr.rel (%p225) target = $region40
    $region39: #{tpu_custom_call.1} parent=5 // pred_region
      // Predicated region
      $region41: #{tpu_custom_call.1} parent=39 // pred_check
        %p228 = pneg %p33
      $region42: #{tpu_custom_call.1} parent=39 // pred_check_branch
        %230 = sbr.rel (%p228) target = $region44
      $region43: #{tpu_custom_call.1} parent=39 // pred_region
        %p231 = scmp.lt.s32.totalorder %s13, 2
        %s232 = scalar_select %p231, %s13, 2
        %s233 = smul.addr %s232, 8
        %s234 = scalar_lea.vmem %s0, %s233
      $region44: #{tpu_custom_call.1} parent=39 // pred_fallthru
        _
    $region40: #{tpu_custom_call.1} parent=5 // pred_fallthru
      _
    %p235 = scmp.le.s32.totalorder 1, %s13
    %p236 = scmp.lt.s32.totalorder %s13, 4
    %p237 = pnand %p235, %p236
    %p238 = pneg %p237
    // Predicated region
    $region45: #{tpu_custom_call.1} parent=5 // pred_check
      _
    $region46: #{tpu_custom_call.1} parent=5 // pred_check_branch
      %240 = sbr.rel (%p237) target = $region48
    $region47: #{tpu_custom_call.1} parent=5 // pred_region
      %s241 = ssub.s32 %s13, 1
      %p242 = scmp.lt.s32.totalorder %s18, 2
      %s243 = scalar_select %p242, %s18, 2
      %s244 = smul.addr %s243, 8
      %s245 = scalar_lea.vmem %s0, %s244
      %p246 = pneg %p39
      %p247 = pneg %p36
      %p248 = pneg %p60
      %p249 = pneg %p57
      %p250 = pneg %p81
      %p251 = pneg %p78
      %p252 = pneg %p102
      %p253 = pneg %p99
      %p254 = pneg %p123
      %p255 = pneg %p120
      %p256 = pneg %p144
      %p257 = pneg %p141
      %p258 = pneg %p165
      %p259 = pneg %p162
      %p260 = pneg %p191
      %p261 = pneg %p188
      %p262 = scmp.lt.s32.totalorder %s18, 2
      %s263 = scalar_select %p262, %s18, 2
      %s264 = smul.addr %s263, 8
      %s265 = scalar_lea.vmem %s7, %s264
      %p266 = scmp.lt.s32.totalorder %s18, 2
      %s267 = scalar_select %p266, %s18, 2
      %s268 = smul.addr %s267, 8
      %s269 = scalar_lea.vmem %s0, %s268
      %p270 = scmp.lt.s32.totalorder %s18, 2
      %s271 = scalar_select %p270, %s18, 2
      %s272 = smul.addr %s271, 8
      %s273 = scalar_lea.vmem %s7, %s272
      %v275 = vld [vmem:[%s269] sm:$0xff]
      %v276 = vpack.c.bf16 %v275, %v275
      %v277 = vld [vmem:[%s1] sm:$0xf]
      %v278 = vld [vmem:[%s1 + $0x4] sm:$0x1]
      %v279 = vld [vmem:[%s2] sm:$0x1]
      %v281 = vlaneseq
      %v282 = vshrl.u32 %v281, 7
      %v283 = vsub.s32 0, %v282
      %v284 = vrot.slane %v279, %v283
      %v288 = vunpack.c.l.b16 %v277
      %v289 = vunpack.c.l.b16 %v278
      %v290 = vpack.c.b16 %v289, %v288
      %vm291 = vcmask 80896
      %v293 = vsel %vm291, %v276, 0
      %vm295 = vcmask 1044480
      %v297 = vsel %vm295, %v290, 0
      %299 = vmatprep.subr.bf16.mxu0 0
      %300 = vmatpush1.bf16.msra.mxu0 0
      %301 = vmatprep.subr.bf16.mxu0 0
      %302 = vmatpush1.bf16.msra.mxu0 0
      %303 = vmatprep.subr.bf16.mxu0 0
      %304 = vmatpush1.bf16.msra.mxu0 0
      %305 = vmatprep.subr.bf16.mxu0 0
      %306 = vmatpush1.bf16.msra.mxu0 0
      %307 = vmatprep.subr.bf16.mxu0 0
      %308 = vmatpush1.bf16.msra.mxu0 0
      %309 = vmatprep.subr.bf16.mxu0 0
      %310 = vmatpush1.bf16.msra.mxu0 0
      %311 = vmatprep.subr.bf16.mxu0 0
      %312 = vmatpush1.bf16.msra.mxu0 0
      %313 = vmatprep.subr.bf16.mxu0 0
      %314 = vmatpush1.bf16.msra.mxu0 %v297
      %315 = vmatprep.subr.bf16.mxu0 0
      %316 = vmatpush2.bf16.msra.mxu0 0
      %317 = vmatprep.subr.bf16.mxu0 0
      %318 = vmatpush2.bf16.msra.mxu0 0
      %319 = vmatprep.subr.bf16.mxu0 0
      %320 = vmatpush2.bf16.msra.mxu0 0
      %321 = vmatprep.subr.bf16.mxu0 0
      %322 = vmatpush2.bf16.msra.mxu0 0
      %323 = vmatprep.subr.bf16.mxu0 0
      %324 = vmatpush2.bf16.msra.mxu0 0
      %325 = vmatprep.subr.bf16.mxu0 0
      %326 = vmatpush2.bf16.msra.mxu0 0
      %327 = vmatprep.subr.bf16.mxu0 0
      %328 = vmatpush2.bf16.msra.mxu0 0
      %329 = vmatprep.subr.bf16.mxu0 0
      %330 = vmatpush2.bf16.msra.mxu0 0
      %331 = vmatprep.mubr.bf16.mxu0 0
      %332 = vmatmul.mubr.bf16.gmra.mxu0 %v293
      %v333 = vpop.f32.mrf.mxu0
      %v334 = vadd.f32 %v284, %v333
      %v335 = vpop.f32.mrf.mxu0
      %v336 = vpop.f32.mrf.mxu0
      %v337 = vpop.f32.mrf.mxu0
      %338 = vdwg.mxu0
      %v339 = vmax.f32 %v334, 0.0
      %v340 = vpack.c.bf16 %v339, %v339
      %v341 = vld [vmem:[%s3] sm:$0xf]
      %v342 = vld [vmem:[%s3 + $0x4] sm:$0xf]
      %v343 = vld [vmem:[%s3 + $0x8] sm:$0xf]
      %v344 = vld [vmem:[%s3 + $0xc] sm:$0xf]
      %v345 = vld [vmem:[%s3 + $0x10] sm:$0xf]
      %v346 = vld [vmem:[%s3 + $0x14] sm:$0xf]
      %v347 = vld [vmem:[%s3 + $0x18] sm:$0xf]
      %v348 = vld [vmem:[%s3 + $0x1c] sm:$0xf]
      %v349 = vld [vmem:[%s4] sm:$0x1]
      %v351 = vlaneseq
      %v352 = vshrl.u32 %v351, 7
      %v353 = vsub.s32 0, %v352
      %v354 = vrot.slane %v349, %v353
      %v364 = vunpack.c.l.b16 %v341
      %v365 = vunpack.c.l.b16 %v342
      %v366 = vunpack.c.l.b16 %v343
      %v367 = vunpack.c.l.b16 %v344
      %v368 = vunpack.c.l.b16 %v345
      %v369 = vunpack.c.l.b16 %v346
      %v370 = vunpack.c.l.b16 %v347
      %v371 = vunpack.c.l.b16 %v348
      %v372 = vpack.c.b16 %v365, %v364
      %v373 = vpack.c.b16 %v367, %v366
      %v374 = vpack.c.b16 %v369, %v368
      %v375 = vpack.c.b16 %v371, %v370
      %vm380 = vcmask 523264
      %v382 = vsel %vm380, %v340, 0
      %384 = vmatprep.subr.bf16.mxu0 0
      %385 = vmatpush1.bf16.msra.mxu0 0
      %386 = vmatprep.subr.bf16.mxu0 0
      %387 = vmatpush1.bf16.msra.mxu0 0
      %388 = vmatprep.subr.bf16.mxu0 0
      %389 = vmatpush1.bf16.msra.mxu0 0
      %390 = vmatprep.subr.bf16.mxu0 0
      %391 = vmatpush1.bf16.msra.mxu0 0
      %392 = vmatprep.subr.bf16.mxu0 0
      %393 = vmatpush1.bf16.msra.mxu0 %v375
      %394 = vmatprep.subr.bf16.mxu0 0
      %395 = vmatpush1.bf16.msra.mxu0 %v374
      %396 = vmatprep.subr.bf16.mxu0 0
      %397 = vmatpush1.bf16.msra.mxu0 %v373
      %398 = vmatprep.subr.bf16.mxu0 0
      %399 = vmatpush1.bf16.msra.mxu0 %v372
      %400 = vmatprep.subr.bf16.mxu0 0
      %401 = vmatpush2.bf16.msra.mxu0 0
      %402 = vmatprep.subr.bf16.mxu0 0
      %403 = vmatpush2.bf16.msra.mxu0 0
      %404 = vmatprep.subr.bf16.mxu0 0
      %405 = vmatpush2.bf16.msra.mxu0 0
      %406 = vmatprep.subr.bf16.mxu0 0
      %407 = vmatpush2.bf16.msra.mxu0 0
      %408 = vmatprep.subr.bf16.mxu0 0
      %409 = vmatpush2.bf16.msra.mxu0 0
      %410 = vmatprep.subr.bf16.mxu0 0
      %411 = vmatpush2.bf16.msra.mxu0 0
      %412 = vmatprep.subr.bf16.mxu0 0
      %413 = vmatpush2.bf16.msra.mxu0 0
      %414 = vmatprep.subr.bf16.mxu0 0
      %415 = vmatpush2.bf16.msra.mxu0 0
      %416 = vmatprep.mubr.bf16.mxu0 0
      %417 = vmatmul.mubr.bf16.gmra.mxu0 %v382
      %v418 = vpop.f32.mrf.mxu0
      %v419 = vadd.f32 %v354, %v418
      %v420 = vpop.f32.mrf.mxu0
      %v421 = vpop.f32.mrf.mxu0
      %v422 = vpop.f32.mrf.mxu0
      %423 = vdwg.mxu0
      %v424 = vmax.f32 %v419, 0.0
      %v425 = vpack.c.bf16 %v424, %v424
      %v426 = vld [vmem:[%s5] sm:$0xf]
      %v427 = vld [vmem:[%s5 + $0x4] sm:$0xf]
      %v428 = vld [vmem:[%s5 + $0x8] sm:$0xf]
      %v429 = vld [vmem:[%s5 + $0xc] sm:$0xf]
      %v430 = vld [vmem:[%s6] sm:$0x1]
      %v432 = vlaneseq
      %v433 = vshrl.u32 %v432, 7
      %v434 = vsub.s32 0, %v433
      %v435 = vrot.slane %v430, %v434
      %v441 = vunpack.c.l.b16 %v426
      %v442 = vunpack.c.l.b16 %v427
      %v443 = vunpack.c.l.b16 %v428
      %v444 = vunpack.c.l.b16 %v429
      %v445 = vpack.c.b16 %v442, %v441
      %v446 = vpack.c.b16 %v444, %v443
      %vm449 = vcmask 261120
      %v451 = vsel %vm449, %v425, 0
      %453 = vmatprep.subr.bf16.mxu0 0
      %454 = vmatpush1.bf16.msra.mxu0 0
      %455 = vmatprep.subr.bf16.mxu0 0
      %456 = vmatpush1.bf16.msra.mxu0 0
      %457 = vmatprep.subr.bf16.mxu0 0
      %458 = vmatpush1.bf16.msra.mxu0 0
      %459 = vmatprep.subr.bf16.mxu0 0
      %460 = vmatpush1.bf16.msra.mxu0 0
      %461 = vmatprep.subr.bf16.mxu0 0
      %462 = vmatpush1.bf16.msra.mxu0 0
      %463 = vmatprep.subr.bf16.mxu0 0
      %464 = vmatpush1.bf16.msra.mxu0 0
      %465 = vmatprep.subr.bf16.mxu0 0
      %466 = vmatpush1.bf16.msra.mxu0 %v446
      %467 = vmatprep.subr.bf16.mxu0 0
      %468 = vmatpush1.bf16.msra.mxu0 %v445
      %469 = vmatprep.subr.bf16.mxu0 0
      %470 = vmatpush2.bf16.msra.mxu0 0
      %471 = vmatprep.subr.bf16.mxu0 0
      %472 = vmatpush2.bf16.msra.mxu0 0
      %473 = vmatprep.subr.bf16.mxu0 0
      %474 = vmatpush2.bf16.msra.mxu0 0
      %475 = vmatprep.subr.bf16.mxu0 0
      %476 = vmatpush2.bf16.msra.mxu0 0
      %477 = vmatprep.subr.bf16.mxu0 0
      %478 = vmatpush2.bf16.msra.mxu0 0
      %479 = vmatprep.subr.bf16.mxu0 0
      %480 = vmatpush2.bf16.msra.mxu0 0
      %481 = vmatprep.subr.bf16.mxu0 0
      %482 = vmatpush2.bf16.msra.mxu0 0
      %483 = vmatprep.subr.bf16.mxu0 0
      %484 = vmatpush2.bf16.msra.mxu0 0
      %485 = vmatprep.mubr.bf16.mxu0 0
      %486 = vmatmul.mubr.bf16.gmra.mxu0 %v451
      %v487 = vpop.f32.mrf.mxu0
      %v488 = vadd.f32 %v435, %v487
      %v489 = vpop.f32.mrf.mxu0
      %v490 = vpop.f32.mrf.mxu0
      %v491 = vpop.f32.mrf.mxu0
      %492 = vdwg.mxu0
      %v493 = vxor.u32 %v488, 2147483648
      %v494 = vmul.f32 %v493, 1.442695
      %v495 = vpow.pop %v494
      %v496 = vadd.f32 %v495, 1.0
      %v497 = vrcp.pop %v496
      %v498 = vmul.f32 1.0, %v497
      %vm499 = vcmask 15360
      %500 = vst.msk [vmem:[%s273] sm:$0xff] %vm499, %v498
      %p501 = scmp.lt.s32.totalorder %s18, 2
      %s502 = scalar_select %p501, %s18, 2
      %s503 = smul.addr %s502, 8
      %s504 = scalar_lea.vmem %s7, %s503
      // Predicated region
      $region49: #{tpu_custom_call.1} parent=47 // pred_check
        %p505 = pneg %p188
      $region50: #{tpu_custom_call.1} parent=47 // pred_check_branch
        %507 = sbr.rel (%p505) target = $region52
      $region51: #{tpu_custom_call.1} parent=47 // pred_region
        _
      $region52: #{tpu_custom_call.1} parent=47 // pred_fallthru
        _
    $region48: #{tpu_custom_call.1} parent=5 // pred_fallthru
      _
    %p508 = scmp.le.s32.totalorder 2, %s13
    // Predicated region
    $region53: #{tpu_custom_call.1} parent=5 // pred_check
      %p509 = pneg %p508
    $region54: #{tpu_custom_call.1} parent=5 // pred_check_branch
      %511 = sbr.rel (%p509) target = $region56
    $region55: #{tpu_custom_call.1} parent=5 // pred_region
      %s512 = ssub.s32 %s13, 2
      // Predicated region
      $region57: #{tpu_custom_call.1} parent=55 // pred_check
        %p513 = pneg %p194
      $region58: #{tpu_custom_call.1} parent=55 // pred_check_branch
        %515 = sbr.rel (%p513) target = $region60
      $region59: #{tpu_custom_call.1} parent=55 // pred_region
        %p516 = scmp.lt.s32.totalorder %s19, 2
        %s517 = scalar_select %p516, %s19, 2
        %s518 = smul.addr %s517, 8
        %s519 = scalar_lea.vmem %s7, %s518
      $region60: #{tpu_custom_call.1} parent=55 // pred_fallthru
        _
    $region56: #{tpu_custom_call.1} parent=5 // pred_fallthru
      _
  $region6: #{tpu_custom_call.1} parent=0 // loop_footer
    %s17 = sadd.s32 1, %s13
  $region7: #{tpu_custom_call.1} parent=0 // loop_footer_branch
    %12 = sbr.rel target = $region3
  $region8: #{tpu_custom_call.1} parent=0 // loop_exit
    _

</llo_original>
